<compile_context>
chip_gen: v5e
topology: v5e:2x2
jax: 0.10.0
libtpu: 0.0.40
codegen_flags: <defaults>
</compile_context>

<pallas_src>
import math

import jax
import jax.numpy as jnp
from jax.experimental import pallas as pl
from jax.experimental.pallas import tpu as pltpu

_LANE = 128
_SUBLANE = 8


def _rmsnorm_kernel(x_ref, g_ref, o_ref):
    # x_ref: (block_rows, dim), g_ref: (1, dim) f32 (gamma already * sqrt(dim))
    x = x_ref[...]
    xf = x.astype(jnp.float32)
    sq_sum = jnp.sum(xf * xf, axis=-1, keepdims=True)
    # 1 / max(sqrt(ss), 1e-12)  ==  rsqrt(max(ss, 1e-24))   (sqrt is monotonic)
    inv = jax.lax.rsqrt(jnp.maximum(sq_sum, 1e-24))
    g = g_ref[...]  # (1, dim) float32
    if o_ref.dtype == jnp.float32:
        o_ref[...] = xf * (inv * g)
    else:
        # Narrow store path (bf16/fp16): only the square-sum stays in f32;
        # drops one full-width f32 temporary per block.
        s = (inv * g).astype(o_ref.dtype)
        o_ref[...] = (x * s).astype(o_ref.dtype)


def _pick_block_rows(rows, dim, in_itemsize, out_itemsize, vmem_budget_bytes):
    """Largest row tile whose VMEM footprint fits the budget, with enough grid steps."""
    # Double-buffered input + output blocks, plus ~8 B/elem of f32 compute
    # temporaries (upcast copy + scaled copy) that live in compiler scratch.
    bytes_per_row = dim * (2 * in_itemsize + 2 * out_itemsize + 8)
    br = vmem_budget_bytes // max(bytes_per_row, 1)
    # Keep >= ~8 grid steps (>= 4 per TensorCore on v7x megacore) when rows allow,
    # so both cores get work and the DMA pipeline has something to overlap.
    br = min(int(br), pl.cdiv(rows, 8))
    br = max(_SUBLANE, (br // _SUBLANE) * _SUBLANE)   # multiple of 8 sublanes
    br = min(br, pl.cdiv(rows, _SUBLANE) * _SUBLANE)  # never bigger than rows (rounded)
    return max(br, _SUBLANE)


def rmsnorm(x, gamma, *, block_rows=None,
            vmem_budget_bytes=None, vmem_limit_bytes=None):
    """x: (..., dim) float array, gamma: (dim,). Returns same shape/dtype as x."""
    orig_shape = x.shape
    dim = orig_shape[-1]
    rows = math.prod(orig_shape[:-1]) if len(orig_shape) > 1 else 1

    x2 = x.reshape(rows, dim)

    # Fold the sqrt(dim) scale into gamma once, outside the kernel.
    scale = float(dim) ** 0.5
    g2 = (gamma.astype(jnp.float32) * scale).reshape(1, dim)

    # Generation-aware VMEM sizing (v7x has only 64 MiB per TensorCore).
    if vmem_budget_bytes is None or vmem_limit_bytes is None:
        try:
            info = pltpu.get_tpu_info()
            cap = int(getattr(info, "vmem_capacity_bytes", 128 << 20))
        except Exception:
            cap = 128 << 20
        if vmem_budget_bytes is None:
            vmem_budget_bytes = min(cap // 4, 24 << 20)
        if vmem_limit_bytes is None:
            vmem_limit_bytes = min(int(cap * 0.6), 48 << 20)

    in_itemsize = jnp.dtype(x2.dtype).itemsize
    out_itemsize = jnp.dtype(x.dtype).itemsize

    if block_rows is None:
        block_rows = _pick_block_rows(rows, dim, in_itemsize, out_itemsize,
                                      vmem_budget_bytes)
    block_rows = max(_SUBLANE, (int(block_rows) // _SUBLANE) * _SUBLANE)

    # No row/lane padding: grid over the unpadded array; Pallas masks the
    # partial final block's stores. Block last dim == full `dim` satisfies the
    # (8,128) rule even for ragged dims (e.g. 160).
    n_blocks = pl.cdiv(rows, block_rows)

    out2 = pl.pallas_call(
        _rmsnorm_kernel,
        out_shape=jax.ShapeDtypeStruct((rows, dim), x.dtype),
        grid_spec=pltpu.PrefetchScalarGridSpec(
            num_scalar_prefetch=0,
            grid=(n_blocks,),
            in_specs=[
                pl.BlockSpec((block_rows, dim), lambda i: (i, 0)),
                # grid-invariant gamma block: constant index_map -> fetched once
                pl.BlockSpec((1, dim), lambda i: (0, 0)),
            ],
            out_specs=pl.BlockSpec((block_rows, dim), lambda i: (i, 0)),
        ),
        compiler_params=pltpu.CompilerParams(
            dimension_semantics=("parallel",),
            vmem_limit_bytes=vmem_limit_bytes,
        ),
    )(x2, g2)

    return out2.reshape(orig_shape)


def _ref_rmsnorm(x, gamma):
    xf = x.astype(jnp.float32)
    norm = jnp.sqrt(jnp.sum(xf * xf, axis=-1, keepdims=True))
    dim = x.shape[-1]
    return (xf / jnp.maximum(norm, 1e-12)) * (float(dim) ** 0.5) * gamma.astype(jnp.float32)


if __name__ == "__main__":
    batch, seq, dim = 2, 8, 32
    key = jax.random.PRNGKey(0)
    x = jax.random.normal(key, (batch, seq, dim), dtype=jnp.float32)
    # nn.Parameter(torch.ones(dim)) -> deterministic ones init
    gamma = jnp.ones((dim,), dtype=jnp.float32)

    out = rmsnorm(x, gamma)
    jax.block_until_ready(out)
    ref = _ref_rmsnorm(x, gamma)
    assert out.shape == x.shape and out.dtype == x.dtype
    assert jnp.allclose(out, ref.astype(x.dtype), atol=1e-5, rtol=1e-5), \
        "mismatch vs reference"

    # Non-divisible, larger shape: ragged dim (160) + rows not a tile multiple
    # (exercises the partial final row-block and non-128 lane handling, no pads).
    x2 = jax.random.normal(jax.random.PRNGKey(1), (3, 37, 160), dtype=jnp.float32)
    g2 = jax.random.normal(jax.random.PRNGKey(2), (160,), dtype=jnp.float32)
    out2 = rmsnorm(x2, g2)
    jax.block_until_ready(out2)
    ref2 = _ref_rmsnorm(x2, g2)
    assert jnp.allclose(out2, ref2, atol=1e-5, rtol=1e-5), \
        "mismatch vs reference (tail case)"

    # bf16 path (narrow scale/store): looser tolerance vs f32 reference.
    xb = jax.random.normal(jax.random.PRNGKey(3), (4, 24, 128)).astype(jnp.bfloat16)
    gb = jnp.ones((128,), dtype=jnp.float32)
    outb = rmsnorm(xb, gb)
    jax.block_until_ready(outb)
    refb = _ref_rmsnorm(xb, gb)
    assert outb.dtype == jnp.bfloat16
    assert jnp.allclose(outb.astype(jnp.float32), refb, atol=5e-2, rtol=5e-2), \
        "mismatch vs reference (bf16 case)"

    print("KERNEL_OK")
</pallas_src>

<mosaic_0001>
module attributes {stable_mosaic.version = 11 : i64} {
  func.func @_rmsnorm_kernel(%arg0: i32, %arg1: memref<8x32xf32, #tpu.memory_space<vmem>>, %arg2: memref<1x32xf32, #tpu.memory_space<vmem>>, %arg3: memref<8x32xf32, #tpu.memory_space<vmem>>) attributes {dimension_semantics = [#tpu.dimension_semantics<parallel>], iteration_bounds = array<i64: 2>, scalar_prefetch = 0 : i64, scratch_operands = 0 : i64, tpu.core_type = #tpu.core_type<tc>, window_params = [{transform_indices = @transform_0, window_bounds = array<i64: 8, 32>}, {pipeline_mode = #tpu.pipeline_mode<synchronous>, transform_indices = @transform_1, window_bounds = array<i64: 1, 32>}, {transform_indices = @transform_2, window_bounds = array<i64: 8, 32>}]} {
    %c0 = arith.constant 0 : index
    %c0_0 = arith.constant 0 : index
    %0 = vector.load %arg1[%c0, %c0_0] : memref<8x32xf32, #tpu.memory_space<vmem>>, vector<8x32xf32>
    %1 = arith.mulf %0, %0 : vector<8x32xf32>
    %cst = arith.constant dense<0.000000e+00> : vector<8xf32>
    %2 = vector.multi_reduction <add>, %1, %cst [1] : vector<8x32xf32> to vector<8xf32>
    %3 = vector.shape_cast %2 : vector<8xf32> to vector<8x1xf32>
    %cst_1 = arith.constant 1.000000e-24 : f32
    %4 = vector.broadcast %cst_1 : f32 to vector<8x1xf32>
    %5 = arith.maximumf %3, %4 : vector<8x1xf32>
    %6 = math.rsqrt %5 : vector<8x1xf32>
    %c0_2 = arith.constant 0 : index
    %c0_3 = arith.constant 0 : index
    %7 = vector.load %arg2[%c0_2, %c0_3] : memref<1x32xf32, #tpu.memory_space<vmem>>, vector<1x32xf32>
    %8 = vector.broadcast %6 : vector<8x1xf32> to vector<8x32xf32>
    %9 = vector.broadcast %7 : vector<1x32xf32> to vector<8x32xf32>
    %10 = arith.mulf %8, %9 : vector<8x32xf32>
    %11 = arith.mulf %0, %10 : vector<8x32xf32>
    %c0_4 = arith.constant 0 : index
    %c0_5 = arith.constant 0 : index
    %12 = vector.load %arg3[%c0_4, %c0_5] : memref<8x32xf32, #tpu.memory_space<vmem>>, vector<8x32xf32>
    tpu.vector_store %arg3[%c0_4, %c0_5], %11 {strides = array<i32>} : memref<8x32xf32, #tpu.memory_space<vmem>>, vector<8x32xf32>,
    return
  }
  func.func @transform_0(%arg0: i32) -> (i32, i32) {
    %c0_i32 = arith.constant 0 : i32
    %c0_i32_0 = arith.constant 0 : i32
    return %arg0, %c0_i32 : i32, i32
  }
  func.func @transform_1(%arg0: i32) -> (i32, i32) {
    %c0_i32 = arith.constant 0 : i32
    %c0_i32_0 = arith.constant 0 : i32
    %c0_i32_1 = arith.constant 0 : i32
    return %c0_i32, %c0_i32_0 : i32, i32
  }
  func.func @transform_2(%arg0: i32) -> (i32, i32) {
    %c0_i32 = arith.constant 0 : i32
    %c0_i32_0 = arith.constant 0 : i32
    return %arg0, %c0_i32 : i32, i32
  }
}

</mosaic_0001>

<llo_original>
// kernel: tpu_custom_call.1
$region0: #{tpu_custom_call.1}
  #allocation0 [shape = 'u32[]', space=smem, size = 0x4, offset = 0x4, fixed_abs, tag = 'smem constant byte address 0x4 - core index']
  #allocation1 [shape = 'u32[72,128]{1,0:T(1,128)}', space=vmem, size = 0x9000, scoped, tag = 'internal scratch']
  %s0 = inlined_call_operand.hbm [shape: f32[16,32], index: 0, kind: input, shape index: {}]
  %s1 = inlined_call_operand.hbm [shape: f32[1,32], index: 1, kind: input, shape index: {}]
  %s2 = inlined_call_operand.hbm [shape: f32[16,32], index: 2, kind: output, shape index: {}]
  %s3 = sld [smem:[#allocation0]]
  $region49: #{tpu_custom_call.1} parent=0
    _
  %s5 = ssub.s32 1, %s3
  %s6 = scalar_select 0, %s5, %s3
  $region1: #{tpu_custom_call.1} parent=0
    #allocation2 [shape = 'u8[8192]{0}', space=vmem, size = 0x2000, scoped, tag = 'input window, operand 0']
    #allocation3 [shape = 's32[2]{0}', space=sflag, size = 0x8, scoped, tag = 'scoped memory for tpu_custom_call.1']
    #allocation4 [shape = 's32[2]{0}', space=sflag, size = 0x8, scoped, tag = 'scoped memory for tpu_custom_call.1']
    #allocation5 [shape = 'u8[512]{0}', space=vmem, size = 0x400, scoped, tag = 'input window, operand 1, single buffered']
    #allocation6 [shape = 's32[1]{0}', space=sflag, size = 0x4, scoped, tag = 'scoped memory for tpu_custom_call.1']
    #allocation7 [shape = 'u8[8192]{0}', space=vmem, size = 0x2000, scoped, tag = 'output window, operand 0']
    %7 = vsyncpa [#allocation3], 0
    %s8 = scalar_lea.sflag [#allocation3], 1
    %9 = vsyncpa %s8, 0
    %10 = vsyncpa [#allocation6], 0
    %11 = vsyncpa [#allocation4], 0
    %s12 = scalar_lea.sflag [#allocation4], 1
    %13 = vsyncpa %s12, 0
    loop: start=0, step=1, limit=4
    $region2: #{tpu_custom_call.1} parent=1 // loop_pre_header
      _
    $region3: #{tpu_custom_call.1} parent=1 // loop_header
      %s15 = sphi 0, %s19
      %p16 = scmp.ge.s32.totalorder %s15, 4
      %s25 = sphi 0, %s27
      %s28 = sphi 0, %s25
      %s29 = sphi 0, %s28
      %s45 = sphi 0, %s29
      %s49 = sphi 0, %s49
      %s51 = sphi 0, %s49
      %s52 = sphi 0, %s51
      %s66 = sphi 0, %s52
      %s72 = sphi 0, %s74
      %s75 = sphi 0, %s72
      %s76 = sphi 0, %s75
      %s92 = sphi 0, %s76
    $region4: #{tpu_custom_call.1} parent=1 // loop_header_branch
      %18 = sbr.rel (%p16) target = $region8
    $region5: #{tpu_custom_call.1} parent=1 // loop_body
      %s20 = ssub.s32 %s15, 1
      %s21 = ssub.s32 %s15, 2
      %s22 = sadd.s32 %s15, 1
      %s23 = ssub.s32 %s15, %s22
      %p24 = scmp.eq.s32.totalorder %s23, 0
      %s26 = sadd.s32 %s25, 1
      %s27 = scalar_select %p24, %s25, %s26
      %p30 = pneg %p24
      %p31 = scmp.eq.s32.totalorder %s15, 1
      %p32 = por %p30, %p31
      %p33 = scmp.ne.s32.totalorder %s25, %s28
      %p34 = scmp.eq.s32.totalorder %s15, 0
      %p35 = por %p33, %p34
      %p36 = scmp.ne.s32.totalorder %s25, %s28
      %p37 = scmp.eq.s32.totalorder %s20, 1
      %p38 = por %p36, %p37
      %p39 = scmp.ne.s32.totalorder %s28, %s29
      %p40 = scmp.eq.s32.totalorder %s20, 0
      %p41 = por %p39, %p40
      %p42 = scmp.ne.s32.totalorder %s28, %s29
      %p43 = scmp.eq.s32.totalorder %s21, 1
      %p44 = por %p42, %p43
      %p46 = scmp.ne.s32.totalorder %s29, %s45
      %p47 = scmp.eq.s32.totalorder %s21, 0
      %p48 = por %p46, %p47
      %s50 = sadd.s32 %s49, 1
      %p53 = scmp.eq.s32.totalorder %s15, 1
      %p54 = scmp.ne.s32.totalorder %s49, %s51
      %p55 = scmp.eq.s32.totalorder %s15, 0
      %p56 = por %p54, %p55
      %p57 = scmp.ne.s32.totalorder %s49, %s51
      %p58 = scmp.eq.s32.totalorder %s20, 1
      %p59 = por %p57, %p58
      %p60 = scmp.ne.s32.totalorder %s51, %s52
      %p61 = scmp.eq.s32.totalorder %s20, 0
      %p62 = por %p60, %p61
      %p63 = scmp.ne.s32.totalorder %s51, %s52
      %p64 = scmp.eq.s32.totalorder %s21, 1
      %p65 = por %p63, %p64
      %p67 = scmp.ne.s32.totalorder %s52, %s66
      %p68 = scmp.eq.s32.totalorder %s21, 0
      %p69 = por %p67, %p68
      %s70 = ssub.s32 %s15, %s22
      %p71 = scmp.eq.s32.totalorder %s70, 0
      %s73 = sadd.s32 %s72, 1
      %s74 = scalar_select %p71, %s72, %s73
      %p77 = pneg %p71
      %p78 = scmp.eq.s32.totalorder %s15, 1
      %p79 = por %p77, %p78
      %p80 = scmp.ne.s32.totalorder %s72, %s75
      %p81 = scmp.eq.s32.totalorder %s15, 0
      %p82 = por %p80, %p81
      %p83 = scmp.ne.s32.totalorder %s72, %s75
      %p84 = scmp.eq.s32.totalorder %s20, 1
      %p85 = por %p83, %p84
      %p86 = scmp.ne.s32.totalorder %s75, %s76
      %p87 = scmp.eq.s32.totalorder %s20, 0
      %p88 = por %p86, %p87
      %p89 = scmp.ne.s32.totalorder %s75, %s76
      %p90 = scmp.eq.s32.totalorder %s21, 1
      %p91 = por %p89, %p90
      %p93 = scmp.ne.s32.totalorder %s76, %s92
      %p94 = scmp.eq.s32.totalorder %s21, 0
      %p95 = por %p93, %p94
      %p96 = scmp.le.s32.totalorder 1, %s15
      %p97 = scmp.lt.s32.totalorder %s15, 3
      %p98 = pnand %p96, %p97
      %p99 = pneg %p98
      // Predicated region
      $region9: #{tpu_custom_call.1} parent=5 // pred_check
        _
      $region10: #{tpu_custom_call.1} parent=5 // pred_check_branch
        %101 = sbr.rel (%p98) target = $region12
      $region11: #{tpu_custom_call.1} parent=5 // pred_region
        %s102 = ssub.s32 %s15, 1
        // Predicated region
        $region13: #{tpu_custom_call.1} parent=11 // pred_check
          %p103 = pneg %p62
        $region14: #{tpu_custom_call.1} parent=11 // pred_check_branch
          %105 = sbr.rel (%p103) target = $region16
        $region15: #{tpu_custom_call.1} parent=11 // pred_region
          %107 = vsyncadd [#allocation6], 0
          %s109 = sshll.u32 %s1, 4
          %s110 = int_to_ptr.hbm [resolvable:$true] %s109
          %s111 = sshll.u32 [#allocation5], 4
          %s112 = int_to_ptr.vmem [resolvable:$true] %s111
          %114 = dma.hbm_to_vmem [thread:$0]  %s110, 16, %s112, [#allocation6]
        $region16: #{tpu_custom_call.1} parent=11 // pred_fallthru
          _
      $region12: #{tpu_custom_call.1} parent=5 // pred_fallthru
        _
      %p115 = scmp.lt.s32.totalorder %s15, 2
      // Predicated region
      $region17: #{tpu_custom_call.1} parent=5 // pred_check
        %p116 = pneg %p115
      $region18: #{tpu_custom_call.1} parent=5 // pred_check_branch
        %118 = sbr.rel (%p116) target = $region20
      $region19: #{tpu_custom_call.1} parent=5 // pred_region
        // Predicated region
        $region21: #{tpu_custom_call.1} parent=19 // pred_check
          %p119 = pneg %p35
        $region22: #{tpu_custom_call.1} parent=19 // pred_check_branch
          %121 = sbr.rel (%p119) target = $region24
        $region23: #{tpu_custom_call.1} parent=19 // pred_region
          %s122 = sand.u32 %s25, 1
          %s123 = scalar_lea.sflag [#allocation3], %s122
          %s124 = sand.u32 %s25, 1
          %s125 = smul.addr %s124, 8
          %s126 = scalar_lea.vmem [#allocation2], %s125
          %128 = vsyncadd %s123, 0
          %s129 = smul.addr %s15, 8
          %s130 = scalar_lea.hbm %s0, %s129
          %s132 = sshll.u32 %s130, 4
          %s133 = int_to_ptr.hbm [resolvable:$true] %s132
          %s134 = sshll.u32 %s126, 4
          %s135 = int_to_ptr.vmem [resolvable:$true] %s134
          %137 = dma.hbm_to_vmem [thread:$0]  %s133, 128, %s135, %s123
        $region24: #{tpu_custom_call.1} parent=19 // pred_fallthru
          _
      $region20: #{tpu_custom_call.1} parent=5 // pred_fallthru
        _
      %p138 = scmp.le.s32.totalorder 1, %s15
      %p139 = scmp.lt.s32.totalorder %s15, 3
      %p140 = pnand %p138, %p139
      %p141 = pneg %p140
      // Predicated region
      $region25: #{tpu_custom_call.1} parent=5 // pred_check
        _
      $region26: #{tpu_custom_call.1} parent=5 // pred_check_branch
        %143 = sbr.rel (%p140) target = $region28
      $region27: #{tpu_custom_call.1} parent=5 // pred_region
        %s144 = ssub.s32 %s15, 1
        %s145 = sand.u32 %s28, 1
        %s146 = scalar_lea.sflag [#allocation3], %s145
        %s147 = sand.u32 %s28, 1
        %s148 = smul.addr %s147, 8
        %s149 = scalar_lea.vmem [#allocation2], %s148
        // Predicated region
        $region29: #{tpu_custom_call.1} parent=27 // pred_check
          %p150 = pneg %p41
        $region30: #{tpu_custom_call.1} parent=27 // pred_check_branch
          %152 = sbr.rel (%p150) target = $region32
        $region31: #{tpu_custom_call.1} parent=27 // pred_region
          %154 = dma.done %s146, 128
        $region32: #{tpu_custom_call.1} parent=27 // pred_fallthru
          _
        // Predicated region
        $region33: #{tpu_custom_call.1} parent=27 // pred_check
          %p155 = pneg %p62
        $region34: #{tpu_custom_call.1} parent=27 // pred_check_branch
          %157 = sbr.rel (%p155) target = $region36
        $region35: #{tpu_custom_call.1} parent=27 // pred_region
          %159 = dma.done [#allocation6], 16
        $region36: #{tpu_custom_call.1} parent=27 // pred_fallthru
          _
        %s160 = sand.u32 %s28, 1
        %s161 = scalar_lea.sflag [#allocation3], %s160
        %s162 = sand.u32 %s28, 1
        %s163 = smul.addr %s162, 8
        %s164 = scalar_lea.vmem [#allocation2], %s163
        %p165 = pneg %p41
        %p166 = pneg %p38
        %p167 = pneg %p62
        %p168 = pneg %p59
        %p169 = pneg %p88
        %p170 = pneg %p85
        %s171 = sand.u32 %s75, 1
        %s172 = scalar_lea.sflag [#allocation4], %s171
        %s173 = sand.u32 %s75, 1
        %s174 = smul.addr %s173, 8
        %s175 = scalar_lea.vmem [#allocation7], %s174
        %v176 = vld [vmem:[%s149] sm:$0xff]
        %v177 = vmul.f32 %v176, %v176
        %vm178 = vcmask 261120
        %v179 = vsel %vm178, %v177, 0.0
        %180 = vadd.xlane.f32.xlu0 %v179
        %v181 = vpop.xlane.xlu0 %180
        %v182 = vmax.f32 %v181, 1e-24
        %v183 = vrsqrt.pop %v182
        %v184 = vmul.f32 %v183, %v182
        %v185 = vmul.f32 %v184, %v183
        %v186 = vmul.f32 0.5, %v185
        %v187 = vsub.f32 1.5, %v186
        %v188 = vmul.f32 %v183, %v187
        %vm189 = vweird.f32 %v182
        %vm190 = vweird.f32 %v183
        %vm191 = vmor %vm189, %vm190
        %v192 = vsel %vm191, %v183, %v188
        %v193 = vld [vmem:[#allocation5] sm:$0x1]
        %v195 = vperm.slane %v193, 0
        %v197 = vmul.f32 %v192, %v195
        %v198 = vmul.f32 %v176, %v197
        %199 = vst.msk [vmem:[%s175] sm:$0xff] %vm178, %v198
        %s200 = sand.u32 %s75, 1
        %s201 = scalar_lea.sflag [#allocation4], %s200
        %s202 = sand.u32 %s75, 1
        %s203 = smul.addr %s202, 8
        %s204 = scalar_lea.vmem [#allocation7], %s203
        // Predicated region
        $region37: #{tpu_custom_call.1} parent=27 // pred_check
          %p205 = pneg %p85
        $region38: #{tpu_custom_call.1} parent=27 // pred_check_branch
          %207 = sbr.rel (%p205) target = $region40
        $region39: #{tpu_custom_call.1} parent=27 // pred_region
          %209 = vsyncadd %s201, 0
          %s210 = smul.addr %s20, 8
          %s211 = scalar_lea.hbm %s2, %s210
          %s213 = sshll.u32 %s204, 4
          %s214 = int_to_ptr.vmem [resolvable:$true] %s213
          %s215 = sshll.u32 %s211, 4
          %s216 = int_to_ptr.hbm [resolvable:$true] %s215
          %218 = dma.vmem_to_hbm [thread:$0]  %s214, 128, %s216, %s201
        $region40: #{tpu_custom_call.1} parent=27 // pred_fallthru
          _
      $region28: #{tpu_custom_call.1} parent=5 // pred_fallthru
        _
      %p219 = scmp.le.s32.totalorder 2, %s15
      // Predicated region
      $region41: #{tpu_custom_call.1} parent=5 // pred_check
        %p220 = pneg %p219
      $region42: #{tpu_custom_call.1} parent=5 // pred_check_branch
        %222 = sbr.rel (%p220) target = $region44
      $region43: #{tpu_custom_call.1} parent=5 // pred_region
        %s223 = ssub.s32 %s15, 2
        // Predicated region
        $region45: #{tpu_custom_call.1} parent=43 // pred_check
          %p224 = pneg %p91
        $region46: #{tpu_custom_call.1} parent=43 // pred_check_branch
          %226 = sbr.rel (%p224) target = $region48
        $region47: #{tpu_custom_call.1} parent=43 // pred_region
          %s227 = sand.u32 %s76, 1
          %s228 = scalar_lea.sflag [#allocation4], %s227
          %s229 = sand.u32 %s76, 1
          %s230 = smul.addr %s229, 8
          %s231 = scalar_lea.vmem [#allocation7], %s230
          %233 = dma.done %s228, 128
        $region48: #{tpu_custom_call.1} parent=43 // pred_fallthru
          _
      $region44: #{tpu_custom_call.1} parent=5 // pred_fallthru
        _
    $region6: #{tpu_custom_call.1} parent=1 // loop_footer
      %s19 = sadd.s32 1, %s15
    $region7: #{tpu_custom_call.1} parent=1 // loop_footer_branch
      %14 = sbr.rel target = $region3
    $region8: #{tpu_custom_call.1} parent=1 // loop_exit
      _
    %234 = vsyncpa [#allocation3], 1
    %s235 = scalar_lea.sflag [#allocation3], 1
    %236 = vsyncpa %s235, 1
    %237 = vsyncpa [#allocation6], 1
    %238 = vsyncpa [#allocation4], 1
    %s239 = scalar_lea.sflag [#allocation4], 1
    %240 = vsyncpa %s239, 1

</llo_original>
